<compile_context>
chip_gen: v7x
topology: tpu7x:2x2x1
jax: 0.10.0
libtpu: 0.0.40
codegen_flags: <defaults>
</compile_context>

<pallas_src>
import functools

import numpy as np
import jax
import jax.numpy as jnp
from jax.experimental import pallas as pl
from jax.experimental.pallas import tpu as pltpu

# Small shapes consistent with the module: [batch, n_head, seq, head_dim]
B, H, T, D = 2, 4, 16, 32          # head_dim must be even


def _rope_kernel(x_ref, cos_ref, sin_ref, o_ref, *, half):
    """x_ref/o_ref: [bh_blk, T, D]; cos_ref/sin_ref: [1, T, D/2]."""
    x = x_ref[...].astype(jnp.float32)          # compute in f32 (bf16-safe on v5e)
    x1 = x[..., :half]                          # [bh_blk, T, D/2]
    x2 = x[..., half:]
    # Single explicit broadcast of the tables over the block, reused twice.
    c = jnp.broadcast_to(cos_ref[...], x1.shape)
    s = jnp.broadcast_to(sin_ref[...], x1.shape)
    # rotate_half folded in: first half = x1*cos - x2*sin, second = x2*cos + x1*sin
    o_ref[:, :, :half] = (x1 * c - x2 * s).astype(o_ref.dtype)
    o_ref[:, :, half:] = (x2 * c + x1 * s).astype(o_ref.dtype)


def rotary_positional_embeddings(x, offset=0):
    """x: [B, H, T, D] -> RoPE(x), same shape/dtype (matches the nn.Module)."""
    b, h, t, d = x.shape
    assert d % 2 == 0, "head_dim must be even"
    half = d // 2
    bh = b * h

    # RoPE tables as compile-time constants (numpy -> XLA literals), identical
    # to the PyTorch buffers; `offset` is static.
    inv_freq = 1.0 / (10000.0 ** (np.arange(0, d, 2, dtype=np.float32) / d))     # [D/2]
    pos = np.arange(offset, offset + t, dtype=np.float32)[:, None]               # [T, 1]
    freqs = pos * inv_freq[None, :]                                              # [T, D/2]
    cos_t = jnp.asarray(np.cos(freqs)[None], dtype=jnp.float32)                  # [1, T, D/2]
    sin_t = jnp.asarray(np.sin(freqs)[None], dtype=jnp.float32)

    # Free (contiguous) reshape — pure metadata, no HBM traffic.
    x3 = x.reshape(bh, t, d)
    out_shape = jax.ShapeDtypeStruct((bh, t, d), x.dtype)
    kernel = functools.partial(_rope_kernel, half=half)

    # Pick a B*H block: whole array when small, otherwise bound each input
    # block to ~2 MiB so double-buffered in+out (~8 MiB) fits comfortably in
    # every generation's scoped VMEM (v7x: 64 MiB physical / 32 MiB default).
    # TODO(synk): add a seq-axis grid dimension for extremely long sequences
    # (a single [T, D] row larger than the per-block budget).
    bytes_per_row = t * d * x.dtype.itemsize
    bh_blk = min(bh, max(1, (2 * 1024 * 1024) // max(bytes_per_row, 1)))
    while bh % bh_blk:
        bh_blk -= 1
    n_blk = bh // bh_blk

    if n_blk == 1:
        # Single invocation, no grid scaffolding.
        out = pl.pallas_call(kernel, out_shape=out_shape)(x3, cos_t, sin_t)
    else:
        out = pl.pallas_call(
            kernel,
            out_shape=out_shape,
            grid=(n_blk,),
            in_specs=[
                pl.BlockSpec((bh_blk, t, d), lambda i: (i, 0, 0)),   # x block
                pl.BlockSpec((1, t, half), lambda i: (0, 0, 0)),     # cos (resident)
                pl.BlockSpec((1, t, half), lambda i: (0, 0, 0)),     # sin (resident)
            ],
            out_specs=pl.BlockSpec((bh_blk, t, d), lambda i: (i, 0, 0)),
            compiler_params=pltpu.CompilerParams(
                dimension_semantics=("parallel",)),    # megacore sharding on v7x
        )(x3, cos_t, sin_t)

    return out.reshape(b, h, t, d)                     # free reshape back


# --------------------------- pure-JAX reference ------------------------------
def _reference(x, offset=0):
    b, h, t, d = x.shape
    inv_freq = 1.0 / (10000.0 ** (jnp.arange(0, d, 2, dtype=jnp.float32) / d))
    pos = jnp.arange(offset, offset + t, dtype=jnp.float32)[:, None]
    freqs = pos * inv_freq[None, :]
    emb = jnp.concatenate([freqs, freqs], axis=-1)     # [T, D]
    cos = jnp.cos(emb)[None, None]
    sin = jnp.sin(emb)[None, None]
    x1, x2 = jnp.split(x, 2, axis=-1)
    rot = jnp.concatenate([-x2, x1], axis=-1)
    out = x.astype(jnp.float32) * cos + rot.astype(jnp.float32) * sin
    return out.astype(x.dtype)


if __name__ == "__main__":
    key = jax.random.PRNGKey(0)
    x = jax.random.normal(key, (B, H, T, D), dtype=jnp.float32)

    y = rotary_positional_embeddings(x, offset=0)
    y = jax.block_until_ready(y)

    y_ref = _reference(x, offset=0)
    assert y.shape == (B, H, T, D)
    assert jnp.allclose(y, y_ref, atol=1e-5, rtol=1e-5), "mismatch vs JAX reference"

    print("KERNEL_OK")
</pallas_src>

<mosaic_0001>
module attributes {stable_mosaic.version = 11 : i64} {
  func.func @_rope_kernel(%arg0: memref<8x16x32xf32, #tpu.memory_space<vmem>>, %arg1: memref<1x16x16xf32, #tpu.memory_space<vmem>>, %arg2: memref<1x16x16xf32, #tpu.memory_space<vmem>>, %arg3: memref<8x16x32xf32, #tpu.memory_space<vmem>>) attributes {dimension_semantics = [], scalar_prefetch = 0 : i64, scratch_operands = 0 : i64, tpu.core_type = #tpu.core_type<tc>} {
    %c0 = arith.constant 0 : index
    %c0_0 = arith.constant 0 : index
    %c0_1 = arith.constant 0 : index
    %0 = vector.load %arg0[%c0, %c0_0, %c0_1] : memref<8x16x32xf32, #tpu.memory_space<vmem>>, vector<8x16x32xf32>
    %1 = vector.extract_strided_slice %0 {offsets = [0, 0, 0], sizes = [8, 16, 16], strides = [1, 1, 1]} : vector<8x16x32xf32> to vector<8x16x16xf32>
    %2 = vector.extract_strided_slice %0 {offsets = [0, 0, 16], sizes = [8, 16, 16], strides = [1, 1, 1]} : vector<8x16x32xf32> to vector<8x16x16xf32>
    %c0_2 = arith.constant 0 : index
    %c0_3 = arith.constant 0 : index
    %c0_4 = arith.constant 0 : index
    %3 = vector.load %arg1[%c0_2, %c0_3, %c0_4] : memref<1x16x16xf32, #tpu.memory_space<vmem>>, vector<1x16x16xf32>
    %4 = vector.shape_cast %3 : vector<1x16x16xf32> to vector<1x16x16xf32>
    %5 = vector.broadcast %4 : vector<1x16x16xf32> to vector<8x16x16xf32>
    %c0_5 = arith.constant 0 : index
    %c0_6 = arith.constant 0 : index
    %c0_7 = arith.constant 0 : index
    %6 = vector.load %arg2[%c0_5, %c0_6, %c0_7] : memref<1x16x16xf32, #tpu.memory_space<vmem>>, vector<1x16x16xf32>
    %7 = vector.shape_cast %6 : vector<1x16x16xf32> to vector<1x16x16xf32>
    %8 = vector.broadcast %7 : vector<1x16x16xf32> to vector<8x16x16xf32>
    %9 = arith.mulf %1, %5 : vector<8x16x16xf32>
    %10 = arith.mulf %2, %8 : vector<8x16x16xf32>
    %11 = arith.subf %9, %10 : vector<8x16x16xf32>
    %c0_8 = arith.constant 0 : index
    %c0_9 = arith.constant 0 : index
    %c0_10 = arith.constant 0 : index
    %12 = vector.load %arg3[%c0_8, %c0_9, %c0_10] : memref<8x16x32xf32, #tpu.memory_space<vmem>>, vector<8x16x16xf32>
    tpu.vector_store %arg3[%c0_8, %c0_9, %c0_10], %11 {strides = array<i32>} : memref<8x16x32xf32, #tpu.memory_space<vmem>>, vector<8x16x16xf32>,
    %13 = arith.mulf %2, %5 : vector<8x16x16xf32>
    %14 = arith.mulf %1, %8 : vector<8x16x16xf32>
    %15 = arith.addf %13, %14 : vector<8x16x16xf32>
    %c0_11 = arith.constant 0 : index
    %c0_12 = arith.constant 0 : index
    %c16 = arith.constant 16 : index
    %16 = vector.load %arg3[%c0_11, %c0_12, %c16] : memref<8x16x32xf32, #tpu.memory_space<vmem>>, vector<8x16x16xf32>
    tpu.vector_store %arg3[%c0_11, %c0_12, %c16], %15 {strides = array<i32>} : memref<8x16x32xf32, #tpu.memory_space<vmem>>, vector<8x16x16xf32>,
    return
  }
}

</mosaic_0001>

<llo_original>
// kernel: tpu_custom_call.1
$region0: #{tpu_custom_call.1}
  #allocation0 [shape = 'u32[]', space=smem, size = 0x4, offset = 0x4, fixed_abs, tag = 'smem constant byte address 0x4 - core index']
  #allocation1 [shape = 'u32[144,128]{1,0:T(1,128)}', space=vmem, size = 0x12000, scoped, tag = 'internal scratch']
  %s0 = inlined_call_operand.hbm [shape: f32[8,16,32], index: 0, kind: input, shape index: {}]
  %s1 = inlined_call_operand.hbm [shape: f32[1,16,16], index: 1, kind: input, shape index: {}]
  %s2 = inlined_call_operand.hbm [shape: f32[1,16,16], index: 2, kind: input, shape index: {}]
  %s3 = inlined_call_operand.hbm [shape: f32[8,16,32], index: 3, kind: output, shape index: {}]
  %s4 = sld [smem:[#allocation0]]
  $region34: #{tpu_custom_call.1} parent=0
    _
  %s6 = ssub.s32 1, %s4
  %s7 = scalar_select 0, %s6, %s4
  $region1: #{tpu_custom_call.1} parent=0
    #allocation2 [shape = 'u8[65536]{0}', space=vmem, size = 0x10000, scoped, tag = 'input window, operand 0, single buffered']
    #allocation3 [shape = 's32[1]{0}', space=sflag, size = 0x4, scoped, tag = 'scoped memory for tpu_custom_call.1']
    #allocation4 [shape = 's32[1]{0}', space=sflag, size = 0x4, scoped, tag = 'scoped memory for tpu_custom_call.1']
    #allocation5 [shape = 'u8[8192]{0}', space=vmem, size = 0x2000, scoped, tag = 'input window, operand 1, single buffered']
    #allocation6 [shape = 's32[1]{0}', space=sflag, size = 0x4, scoped, tag = 'scoped memory for tpu_custom_call.1']
    #allocation7 [shape = 'u8[8192]{0}', space=vmem, size = 0x2000, scoped, tag = 'input window, operand 2, single buffered']
    #allocation8 [shape = 'u8[65536]{0}', space=vmem, size = 0x10000, scoped, tag = 'output window, operand 0, single buffered']
    %8 = vsyncpa [#allocation3], 0
    %9 = vsyncpa [#allocation6], 0
    %10 = vsyncpa [#allocation4], 0
    // Predicated region
    $region2: #{tpu_custom_call.1} parent=1 // pred_check
      _
    $region3: #{tpu_custom_call.1} parent=1 // pred_check_branch
      %12 = sbr.rel (0) target = $region5
    $region4: #{tpu_custom_call.1} parent=1 // pred_region
      %s14 = ssub.s32 2048, 2048
      %15 = vsyncadd [#allocation3], %s14
      %s16 = sshll.u32 [#allocation2], 4
      %s17 = int_to_ptr.vmem [resolvable:$true] %s16
      %22 = dma.hbm_to_vmem [thread:$0]  %s0, 2048, %s17, [#allocation3], 128, 128, 8
    $region5: #{tpu_custom_call.1} parent=1 // pred_fallthru
      _
    // Predicated region
    $region6: #{tpu_custom_call.1} parent=1 // pred_check
      _
    $region7: #{tpu_custom_call.1} parent=1 // pred_check_branch
      %24 = sbr.rel (0) target = $region9
    $region8: #{tpu_custom_call.1} parent=1 // pred_region
      %s26 = ssub.s32 256, 256
      %27 = vsyncadd [#allocation6], %s26
      %s28 = sshll.u32 [#allocation5], 4
      %s29 = int_to_ptr.vmem [resolvable:$true] %s28
      %34 = dma.hbm_to_vmem [thread:$0]  %s1, 256, %s29, [#allocation6], 128, 128, 8
    $region9: #{tpu_custom_call.1} parent=1 // pred_fallthru
      _
    // Predicated region
    $region10: #{tpu_custom_call.1} parent=1 // pred_check
      _
    $region11: #{tpu_custom_call.1} parent=1 // pred_check_branch
      %36 = sbr.rel (0) target = $region13
    $region12: #{tpu_custom_call.1} parent=1 // pred_region
      %s38 = ssub.s32 256, 256
      %39 = vsyncadd [#allocation6], %s38
      %s40 = sshll.u32 [#allocation7], 4
      %s41 = int_to_ptr.vmem [resolvable:$true] %s40
      %46 = dma.hbm_to_vmem [thread:$0]  %s2, 256, %s41, [#allocation6], 128, 128, 8
    $region13: #{tpu_custom_call.1} parent=1 // pred_fallthru
      _
    // Predicated region
    $region14: #{tpu_custom_call.1} parent=1 // pred_check
      _
    $region15: #{tpu_custom_call.1} parent=1 // pred_check_branch
      %48 = sbr.rel (0) target = $region17
    $region16: #{tpu_custom_call.1} parent=1 // pred_region
      %49 = dma.done [#allocation3], 2048
    $region17: #{tpu_custom_call.1} parent=1 // pred_fallthru
      _
    // Predicated region
    $region18: #{tpu_custom_call.1} parent=1 // pred_check
      _
    $region19: #{tpu_custom_call.1} parent=1 // pred_check_branch
      %51 = sbr.rel (0) target = $region21
    $region20: #{tpu_custom_call.1} parent=1 // pred_region
      %52 = dma.done [#allocation6], 256
    $region21: #{tpu_custom_call.1} parent=1 // pred_fallthru
      _
    // Predicated region
    $region22: #{tpu_custom_call.1} parent=1 // pred_check
      _
    $region23: #{tpu_custom_call.1} parent=1 // pred_check_branch
      %54 = sbr.rel (0) target = $region25
    $region24: #{tpu_custom_call.1} parent=1 // pred_region
      %55 = dma.done [#allocation6], 256
    $region25: #{tpu_custom_call.1} parent=1 // pred_fallthru
      _
    %v56 = vld [vmem:[#allocation2] sm:$0xff]
    %v57 = vld [vmem:[#allocation2 + $0x8] sm:$0xff]
    %v58 = vld [vmem:[#allocation2 + $0x10] sm:$0xff]
    %v59 = vld [vmem:[#allocation2 + $0x18] sm:$0xff]
    %v60 = vld [vmem:[#allocation2 + $0x20] sm:$0xff]
    %v61 = vld [vmem:[#allocation2 + $0x28] sm:$0xff]
    %v62 = vld [vmem:[#allocation2 + $0x30] sm:$0xff]
    %v63 = vld [vmem:[#allocation2 + $0x38] sm:$0xff]
    %v64 = vld [vmem:[#allocation2 + $0x40] sm:$0xff]
    %v65 = vld [vmem:[#allocation2 + $0x48] sm:$0xff]
    %v66 = vld [vmem:[#allocation2 + $0x50] sm:$0xff]
    %v67 = vld [vmem:[#allocation2 + $0x58] sm:$0xff]
    %v68 = vld [vmem:[#allocation2 + $0x60] sm:$0xff]
    %v69 = vld [vmem:[#allocation2 + $0x68] sm:$0xff]
    %v70 = vld [vmem:[#allocation2 + $0x70] sm:$0xff]
    %v71 = vld [vmem:[#allocation2 + $0x78] sm:$0xff]
    %v72 = vld [vmem:[#allocation5] sm:$0xff]
    %v73 = vld [vmem:[#allocation5 + $0x8] sm:$0xff]
    %v74 = vld [vmem:[#allocation7] sm:$0xff]
    %v75 = vld [vmem:[#allocation7 + $0x8] sm:$0xff]
    %v76 = vmul.f32 %v56, %v72
    %v77 = vmul.f32 %v57, %v73
    %v78 = vmul.f32 %v58, %v72
    %v79 = vmul.f32 %v59, %v73
    %v80 = vmul.f32 %v60, %v72
    %v81 = vmul.f32 %v61, %v73
    %v82 = vmul.f32 %v62, %v72
    %v83 = vmul.f32 %v63, %v73
    %v84 = vmul.f32 %v64, %v72
    %v85 = vmul.f32 %v65, %v73
    %v86 = vmul.f32 %v66, %v72
    %v87 = vmul.f32 %v67, %v73
    %v88 = vmul.f32 %v68, %v72
    %v89 = vmul.f32 %v69, %v73
    %v90 = vmul.f32 %v70, %v72
    %v91 = vmul.f32 %v71, %v73
    %94 = vrot.lane.b32.xlu0 %v74, 16
    %v95 = vpop.permute.xlu0 %94
    %96 = vrot.lane.b32.xlu0 %v75, 16
    %v97 = vpop.permute.xlu0 %96
    %v100 = vmul.f32 %v56, %v95
    %v101 = vmul.f32 %v57, %v97
    %v102 = vmul.f32 %v58, %v95
    %v103 = vmul.f32 %v59, %v97
    %v104 = vmul.f32 %v60, %v95
    %v105 = vmul.f32 %v61, %v97
    %v106 = vmul.f32 %v62, %v95
    %v107 = vmul.f32 %v63, %v97
    %v108 = vmul.f32 %v64, %v95
    %v109 = vmul.f32 %v65, %v97
    %v110 = vmul.f32 %v66, %v95
    %v111 = vmul.f32 %v67, %v97
    %v112 = vmul.f32 %v68, %v95
    %v113 = vmul.f32 %v69, %v97
    %v114 = vmul.f32 %v70, %v95
    %v115 = vmul.f32 %v71, %v97
    %132 = vrot.lane.b32.xlu0 %v100, 112
    %v133 = vpop.permute.xlu0 %132
    %134 = vrot.lane.b32.xlu0 %v101, 112
    %v135 = vpop.permute.xlu0 %134
    %136 = vrot.lane.b32.xlu0 %v102, 112
    %v137 = vpop.permute.xlu0 %136
    %138 = vrot.lane.b32.xlu0 %v103, 112
    %v139 = vpop.permute.xlu0 %138
    %140 = vrot.lane.b32.xlu0 %v104, 112
    %v141 = vpop.permute.xlu0 %140
    %142 = vrot.lane.b32.xlu0 %v105, 112
    %v143 = vpop.permute.xlu0 %142
    %144 = vrot.lane.b32.xlu0 %v106, 112
    %v145 = vpop.permute.xlu0 %144
    %146 = vrot.lane.b32.xlu0 %v107, 112
    %v147 = vpop.permute.xlu0 %146
    %148 = vrot.lane.b32.xlu0 %v108, 112
    %v149 = vpop.permute.xlu0 %148
    %150 = vrot.lane.b32.xlu0 %v109, 112
    %v151 = vpop.permute.xlu0 %150
    %152 = vrot.lane.b32.xlu0 %v110, 112
    %v153 = vpop.permute.xlu0 %152
    %154 = vrot.lane.b32.xlu0 %v111, 112
    %v155 = vpop.permute.xlu0 %154
    %156 = vrot.lane.b32.xlu0 %v112, 112
    %v157 = vpop.permute.xlu0 %156
    %158 = vrot.lane.b32.xlu0 %v113, 112
    %v159 = vpop.permute.xlu0 %158
    %160 = vrot.lane.b32.xlu0 %v114, 112
    %v161 = vpop.permute.xlu0 %160
    %162 = vrot.lane.b32.xlu0 %v115, 112
    %v163 = vpop.permute.xlu0 %162
    %v180 = vsub.f32 %v76, %v133
    %v181 = vsub.f32 %v77, %v135
    %v182 = vsub.f32 %v78, %v137
    %v183 = vsub.f32 %v79, %v139
    %v184 = vsub.f32 %v80, %v141
    %v185 = vsub.f32 %v81, %v143
    %v186 = vsub.f32 %v82, %v145
    %v187 = vsub.f32 %v83, %v147
    %v188 = vsub.f32 %v84, %v149
    %v189 = vsub.f32 %v85, %v151
    %v190 = vsub.f32 %v86, %v153
    %v191 = vsub.f32 %v87, %v155
    %v192 = vsub.f32 %v88, %v157
    %v193 = vsub.f32 %v89, %v159
    %v194 = vsub.f32 %v90, %v161
    %v195 = vsub.f32 %v91, %v163
    %vm196 = vcmask 130048
    %197 = vst.msk [vmem:[#allocation8] sm:$0xff] %vm196, %v180
    %198 = vst.msk [vmem:[#allocation8 + $0x8] sm:$0xff] %vm196, %v181
    %199 = vst.msk [vmem:[#allocation8 + $0x10] sm:$0xff] %vm196, %v182
    %200 = vst.msk [vmem:[#allocation8 + $0x18] sm:$0xff] %vm196, %v183
    %201 = vst.msk [vmem:[#allocation8 + $0x20] sm:$0xff] %vm196, %v184
    %202 = vst.msk [vmem:[#allocation8 + $0x28] sm:$0xff] %vm196, %v185
    %203 = vst.msk [vmem:[#allocation8 + $0x30] sm:$0xff] %vm196, %v186
    %204 = vst.msk [vmem:[#allocation8 + $0x38] sm:$0xff] %vm196, %v187
    %205 = vst.msk [vmem:[#allocation8 + $0x40] sm:$0xff] %vm196, %v188
    %206 = vst.msk [vmem:[#allocation8 + $0x48] sm:$0xff] %vm196, %v189
    %207 = vst.msk [vmem:[#allocation8 + $0x50] sm:$0xff] %vm196, %v190
    %208 = vst.msk [vmem:[#allocation8 + $0x58] sm:$0xff] %vm196, %v191
    %209 = vst.msk [vmem:[#allocation8 + $0x60] sm:$0xff] %vm196, %v192
    %210 = vst.msk [vmem:[#allocation8 + $0x68] sm:$0xff] %vm196, %v193
    %211 = vst.msk [vmem:[#allocation8 + $0x70] sm:$0xff] %vm196, %v194
    %212 = vst.msk [vmem:[#allocation8 + $0x78] sm:$0xff] %vm196, %v195
    %215 = vrot.lane.b32.xlu0 %v72, 16
    %v216 = vpop.permute.xlu0 %215
    %217 = vrot.lane.b32.xlu0 %v73, 16
    %v218 = vpop.permute.xlu0 %217
    %v221 = vmul.f32 %v56, %v216
    %v222 = vmul.f32 %v57, %v218
    %v223 = vmul.f32 %v58, %v216
    %v224 = vmul.f32 %v59, %v218
    %v225 = vmul.f32 %v60, %v216
    %v226 = vmul.f32 %v61, %v218
    %v227 = vmul.f32 %v62, %v216
    %v228 = vmul.f32 %v63, %v218
    %v229 = vmul.f32 %v64, %v216
    %v230 = vmul.f32 %v65, %v218
    %v231 = vmul.f32 %v66, %v216
    %v232 = vmul.f32 %v67, %v218
    %v233 = vmul.f32 %v68, %v216
    %v234 = vmul.f32 %v69, %v218
    %v235 = vmul.f32 %v70, %v216
    %v236 = vmul.f32 %v71, %v218
    %v237 = vmul.f32 %v56, %v74
    %v238 = vmul.f32 %v57, %v75
    %v239 = vmul.f32 %v58, %v74
    %v240 = vmul.f32 %v59, %v75
    %v241 = vmul.f32 %v60, %v74
    %v242 = vmul.f32 %v61, %v75
    %v243 = vmul.f32 %v62, %v74
    %v244 = vmul.f32 %v63, %v75
    %v245 = vmul.f32 %v64, %v74
    %v246 = vmul.f32 %v65, %v75
    %v247 = vmul.f32 %v66, %v74
    %v248 = vmul.f32 %v67, %v75
    %v249 = vmul.f32 %v68, %v74
    %v250 = vmul.f32 %v69, %v75
    %v251 = vmul.f32 %v70, %v74
    %v252 = vmul.f32 %v71, %v75
    %269 = vrot.lane.b32.xlu0 %v237, 16
    %v270 = vpop.permute.xlu0 %269
    %271 = vrot.lane.b32.xlu0 %v238, 16
    %v272 = vpop.permute.xlu0 %271
    %273 = vrot.lane.b32.xlu0 %v239, 16
    %v274 = vpop.permute.xlu0 %273
    %275 = vrot.lane.b32.xlu0 %v240, 16
    %v276 = vpop.permute.xlu0 %275
    %277 = vrot.lane.b32.xlu0 %v241, 16
    %v278 = vpop.permute.xlu0 %277
    %279 = vrot.lane.b32.xlu0 %v242, 16
    %v280 = vpop.permute.xlu0 %279
    %281 = vrot.lane.b32.xlu0 %v243, 16
    %v282 = vpop.permute.xlu0 %281
    %283 = vrot.lane.b32.xlu0 %v244, 16
    %v284 = vpop.permute.xlu0 %283
    %285 = vrot.lane.b32.xlu0 %v245, 16
    %v286 = vpop.permute.xlu0 %285
    %287 = vrot.lane.b32.xlu0 %v246, 16
    %v288 = vpop.permute.xlu0 %287
    %289 = vrot.lane.b32.xlu0 %v247, 16
    %v290 = vpop.permute.xlu0 %289
    %291 = vrot.lane.b32.xlu0 %v248, 16
    %v292 = vpop.permute.xlu0 %291
    %293 = vrot.lane.b32.xlu0 %v249, 16
    %v294 = vpop.permute.xlu0 %293
    %295 = vrot.lane.b32.xlu0 %v250, 16
    %v296 = vpop.permute.xlu0 %295
    %297 = vrot.lane.b32.xlu0 %v251, 16
    %v298 = vpop.permute.xlu0 %297
    %299 = vrot.lane.b32.xlu0 %v252, 16
    %v300 = vpop.permute.xlu0 %299
    %v317 = vadd.f32 %v221, %v270
    %v318 = vadd.f32 %v222, %v272
    %v319 = vadd.f32 %v223, %v274
    %v320 = vadd.f32 %v224, %v276
    %v321 = vadd.f32 %v225, %v278
    %v322 = vadd.f32 %v226, %v280
    %v323 = vadd.f32 %v227, %v282
    %v324 = vadd.f32 %v228, %v284
    %v325 = vadd.f32 %v229, %v286
    %v326 = vadd.f32 %v230, %v288
    %v327 = vadd.f32 %v231, %v290
    %v328 = vadd.f32 %v232, %v292
    %v329 = vadd.f32 %v233, %v294
    %v330 = vadd.f32 %v234, %v296
    %v331 = vadd.f32 %v235, %v298
    %v332 = vadd.f32 %v236, %v300
    %vm333 = vcmask 261248
    %334 = vst.msk [vmem:[#allocation8] sm:$0xff] %vm333, %v317
    %335 = vst.msk [vmem:[#allocation8 + $0x8] sm:$0xff] %vm333, %v318
    %336 = vst.msk [vmem:[#allocation8 + $0x10] sm:$0xff] %vm333, %v319
    %337 = vst.msk [vmem:[#allocation8 + $0x18] sm:$0xff] %vm333, %v320
    %338 = vst.msk [vmem:[#allocation8 + $0x20] sm:$0xff] %vm333, %v321
    %339 = vst.msk [vmem:[#allocation8 + $0x28] sm:$0xff] %vm333, %v322
    %340 = vst.msk [vmem:[#allocation8 + $0x30] sm:$0xff] %vm333, %v323
    %341 = vst.msk [vmem:[#allocation8 + $0x38] sm:$0xff] %vm333, %v324
    %342 = vst.msk [vmem:[#allocation8 + $0x40] sm:$0xff] %vm333, %v325
    %343 = vst.msk [vmem:[#allocation8 + $0x48] sm:$0xff] %vm333, %v326
    %344 = vst.msk [vmem:[#allocation8 + $0x50] sm:$0xff] %vm333, %v327
    %345 = vst.msk [vmem:[#allocation8 + $0x58] sm:$0xff] %vm333, %v328
    %346 = vst.msk [vmem:[#allocation8 + $0x60] sm:$0xff] %vm333, %v329
    %347 = vst.msk [vmem:[#allocation8 + $0x68] sm:$0xff] %vm333, %v330
    %348 = vst.msk [vmem:[#allocation8 + $0x70] sm:$0xff] %vm333, %v331
    %349 = vst.msk [vmem:[#allocation8 + $0x78] sm:$0xff] %vm333, %v332
    // Predicated region
    $region26: #{tpu_custom_call.1} parent=1 // pred_check
      _
    $region27: #{tpu_custom_call.1} parent=1 // pred_check_branch
      %351 = sbr.rel (0) target = $region29
    $region28: #{tpu_custom_call.1} parent=1 // pred_region
      %s353 = ssub.s32 2048, 2048
      %354 = vsyncadd [#allocation4], %s353
      %s355 = sshll.u32 [#allocation8], 4
      %s356 = int_to_ptr.vmem [resolvable:$true] %s355
      %361 = dma.vmem_to_hbm [thread:$0]  %s356, 2048, %s3, [#allocation4], 128, 128, 8
    $region29: #{tpu_custom_call.1} parent=1 // pred_fallthru
      _
    // Predicated region
    $region30: #{tpu_custom_call.1} parent=1 // pred_check
      _
    $region31: #{tpu_custom_call.1} parent=1 // pred_check_branch
      %363 = sbr.rel (0) target = $region33
    $region32: #{tpu_custom_call.1} parent=1 // pred_region
      %364 = dma.done [#allocation4], 2048
    $region33: #{tpu_custom_call.1} parent=1 // pred_fallthru
      _
    %365 = vsyncpa [#allocation3], 1
    %366 = vsyncpa [#allocation6], 1
    %367 = vsyncpa [#allocation4], 1

</llo_original>
